<compile_context>
chip_gen: v5e
topology: v5e:2x2
jax: 0.10.0
libtpu: 0.0.40
codegen_flags: <defaults>
</compile_context>

<pallas_src>
import math

import jax
import jax.numpy as jnp
from jax.experimental import pallas as pl
from jax.experimental.pallas import tpu as pltpu

BN_EPS = 1e-5     # nn.BatchNorm1d default eps
LANE = 128


def _round_up(x, m):
    return (x + m - 1) // m * m


# ------------------------------ Pallas kernel ------------------------------ #

def _make_conv_bn_kernel(m_valid, tm, with_residual):
    """Fused conv(matmul)+bias+ReLU+BatchNorm(train) [+residual+ReLU] kernel.

    Grid = (2, n_tiles): axis 0 is the BN pass (0 = accumulate global stats,
    1 = normalize + store), axis 1 tiles M = N*Lout (lane axis).
    """
    inv_m = 1.0 / float(m_valid)

    def kernel(*refs):
        if with_residual:
            p_ref, w_ref, b_ref, r_ref, o_ref, sum_ref, ssq_ref = refs
        else:
            p_ref, w_ref, b_ref, o_ref, sum_ref, ssq_ref = refs
            r_ref = None

        pass_id = pl.program_id(0)
        tile_id = pl.program_id(1)

        # Conv as matmul on a lane-dense tile:
        #   (Cout, Cin*K) @ (Cin*K, TM) -> (Cout, TM), f32 accumulation.
        y = jnp.dot(w_ref[...], p_ref[...], preferred_element_type=jnp.float32)
        y = jnp.maximum(y + b_ref[...], 0.0)          # bias + ReLU (before BN)

        @pl.when(pass_id == 0)
        def _accumulate():
            @pl.when(tile_id == 0)
            def _init():
                sum_ref[...] = jnp.zeros_like(sum_ref)
                ssq_ref[...] = jnp.zeros_like(ssq_ref)

            # Mask padded M columns out of the batch statistics.
            col = tile_id * tm + jax.lax.broadcasted_iota(jnp.int32, y.shape, 1)
            yv = jnp.where(col < m_valid, y, 0.0)
            sum_ref[...] += jnp.sum(yv, axis=1, keepdims=True)
            ssq_ref[...] += jnp.sum(yv * yv, axis=1, keepdims=True)
            # Placeholder store (overwritten by pass 1); keeps the buffer defined.
            o_ref[...] = y.astype(o_ref.dtype)

        @pl.when(pass_id == 1)
        def _normalize():
            mean = sum_ref[...] * inv_m                        # (Cout, 1)
            var = ssq_ref[...] * inv_m - mean * mean           # biased (torch train)
            rstd = jax.lax.rsqrt(jnp.maximum(var, 0.0) + BN_EPS)
            out = (y - mean) * rstd                            # gamma=1, beta=0
            if with_residual:
                out = jnp.maximum(out + r_ref[...], 0.0)       # fused out+=res; relu
            o_ref[...] = out.astype(o_ref.dtype)

    return kernel


# ------------------------------- JAX wrapper -------------------------------- #

def conv1d_relu_bn(x_cnl, w, b, *, stride, pad, residual=None,
                   tm_max=2048, matmul_dtype=jnp.float32):
    """x_cnl: (Cin, N, L) channels-leading. Returns (Cout, N, Lout).

    One pallas_call per conv: Conv1d -> bias -> ReLU -> BatchNorm1d(train)
    [-> + residual -> ReLU], two-pass (global) BN over tiled M = N*Lout.
    """
    cout, cin, k = w.shape
    cin2, n, l = x_cnl.shape
    assert cin2 == cin
    lout = (l + 2 * pad - k) // stride + 1
    m = n * lout

    # Glue: pad L, take K strided tap slices -> transposed patches (Cin*K, M),
    # M on the lane axis.  Row index is ci*K + kk to match w.reshape(Cout, Cin*K).
    xp = jnp.pad(x_cnl, ((0, 0), (0, 0), (pad, pad)))
    span = stride * (lout - 1) + 1
    taps = [xp[:, :, kk: kk + span: stride] for kk in range(k)]   # K x (Cin, N, Lout)
    pmat = jnp.stack(taps, axis=1).reshape(cin * k, m)

    tm = min(tm_max, _round_up(m, LANE))          # lane-dense tile, multiple of 128
    m_pad = _round_up(m, tm)
    pmat = jnp.pad(pmat, ((0, 0), (0, m_pad - m))).astype(matmul_dtype)
    wmat = w.reshape(cout, cin * k).astype(matmul_dtype)
    bcol = b.reshape(cout, 1).astype(jnp.float32)

    n_tiles = m_pad // tm
    grid = (2, n_tiles)

    in_specs = [
        pl.BlockSpec((cin * k, tm), lambda p, i: (0, i)),
        pl.BlockSpec((cout, cin * k), lambda p, i: (0, 0)),   # weights stay resident
        pl.BlockSpec((cout, 1), lambda p, i: (0, 0)),         # bias stays resident
    ]
    args = [pmat, wmat, bcol]
    with_res = residual is not None
    if with_res:
        rflat = residual.reshape(cout, m).astype(jnp.float32)
        rflat = jnp.pad(rflat, ((0, 0), (0, m_pad - m)))
        in_specs.append(pl.BlockSpec((cout, tm), lambda p, i: (0, i)))
        args.append(rflat)

    out = pl.pallas_call(
        _make_conv_bn_kernel(m, tm, with_res),
        grid=grid,
        in_specs=in_specs,
        out_specs=pl.BlockSpec((cout, tm), lambda p, i: (0, i)),
        out_shape=jax.ShapeDtypeStruct((cout, m_pad), jnp.float32),
        scratch_shapes=[pltpu.VMEM((cout, 1), jnp.float32),   # per-channel sum
                        pltpu.VMEM((cout, 1), jnp.float32)],  # per-channel sum of sq
        compiler_params=pltpu.CompilerParams(
            # Both axes sequential: all M tiles feed one shared BN accumulator
            # and pass 1 needs pass 0's complete statistics.
            dimension_semantics=("arbitrary", "arbitrary"),
            vmem_limit_bytes=32 * 1024 * 1024,
        ),
    )(*args)

    return out[:, :m].reshape(cout, n, lout)


# --------------------------- Module equivalent ------------------------------ #

def _init_conv(key, cin, cout, k, use_bias):
    """kaiming_normal_(mode='fan_out', nonlinearity='relu') + torch bias init."""
    wkey, bkey = jax.random.split(key)
    std = math.sqrt(2.0 / (cout * k))                      # fan_out = Cout * K
    w = jax.random.normal(wkey, (cout, cin, k), jnp.float32) * std
    if use_bias:
        bound = 1.0 / math.sqrt(cin * k)
        b = jax.random.uniform(bkey, (cout,), jnp.float32, -bound, bound)
    else:
        b = jnp.zeros((cout,), jnp.float32)
    return w, b


class BasicBlock1DPallas:
    """JAX/Pallas port of BasicBlock1D (training-mode BatchNorm, gamma=1, beta=0)."""

    def __init__(self, in_channels, out_channels, is_conv_bias, key):
        self.is_bottle_neck = in_channels != out_channels
        keys = jax.random.split(key, 4)
        if not self.is_bottle_neck:
            self.w1, self.b1 = _init_conv(keys[0], in_channels, in_channels, 3, is_conv_bias)
            self.w2, self.b2 = _init_conv(keys[1], in_channels, in_channels, 3, is_conv_bias)
        else:
            # conv1: k=1 s=1 p=1 (padding on a 1x1 conv, per the PyTorch module)
            self.w1, self.b1 = _init_conv(keys[0], in_channels, in_channels, 1, is_conv_bias)
            self.w2, self.b2 = _init_conv(keys[1], in_channels, in_channels, 3, is_conv_bias)
            self.w3, self.b3 = _init_conv(keys[2], in_channels, out_channels, 1, is_conv_bias)
            self.wr, self.br = _init_conv(keys[3], in_channels, out_channels, 3, is_conv_bias)

    def __call__(self, x):
        # NCL -> internal (C, N, L); converted back only at block exit.
        xi = jnp.transpose(x, (1, 0, 2))
        if not self.is_bottle_neck:
            h = conv1d_relu_bn(xi, self.w1, self.b1, stride=1, pad=1)
            out = conv1d_relu_bn(h, self.w2, self.b2, stride=1, pad=1, residual=xi)
        else:
            res = conv1d_relu_bn(xi, self.wr, self.br, stride=2, pad=1)
            h = conv1d_relu_bn(xi, self.w1, self.b1, stride=1, pad=1)
            h = conv1d_relu_bn(h, self.w2, self.b2, stride=2, pad=0)
            out = conv1d_relu_bn(h, self.w3, self.b3, stride=1, pad=0, residual=res)
        return jnp.transpose(out, (1, 0, 2))               # back to (N, C, L)


# ------------------------- pure-JAX reference check ------------------------- #

def _ref_conv_relu_bn(x_ncl, w, b, stride, pad):
    y = jax.lax.conv_general_dilated(
        x_ncl, w, window_strides=(stride,), padding=[(pad, pad)],
        dimension_numbers=("NCH", "OIH", "NCH"),
        precision=jax.lax.Precision.HIGHEST)
    y = jnp.maximum(y + b[None, :, None], 0.0)
    mean = jnp.mean(y, axis=(0, 2), keepdims=True)
    var = jnp.mean((y - mean) ** 2, axis=(0, 2), keepdims=True)
    return (y - mean) / jnp.sqrt(var + BN_EPS)


def _ref_block(block, x):
    if not block.is_bottle_neck:
        h = _ref_conv_relu_bn(x, block.w1, block.b1, 1, 1)
        h = _ref_conv_relu_bn(h, block.w2, block.b2, 1, 1)
        r = x
    else:
        h = _ref_conv_relu_bn(x, block.w1, block.b1, 1, 1)
        h = _ref_conv_relu_bn(h, block.w2, block.b2, 2, 0)
        h = _ref_conv_relu_bn(h, block.w3, block.b3, 1, 0)
        r = _ref_conv_relu_bn(x, block.wr, block.br, 2, 1)
    return jnp.maximum(h + r, 0.0)


# --------------------------------- main ------------------------------------- #

if __name__ == "__main__":
    root = jax.random.PRNGKey(0)
    kx, ka, kb = jax.random.split(root, 3)

    # Input consistent with Conv1d: (batch=2, channels=4, length=16)
    x = jax.random.normal(kx, (2, 4, 16), jnp.float32)

    # Non-bottleneck branch (in_channels == out_channels)
    block_same = BasicBlock1DPallas(in_channels=4, out_channels=4, is_conv_bias=True, key=ka)
    y_same = block_same(x)                  # (2, 4, 16)

    # Bottleneck branch (in_channels != out_channels)
    block_bneck = BasicBlock1DPallas(in_channels=4, out_channels=8, is_conv_bias=True, key=kb)
    y_bneck = block_bneck(x)                # (2, 8, 8)

    jax.block_until_ready((y_same, y_bneck))
    assert y_same.shape == (2, 4, 16) and y_bneck.shape == (2, 8, 8)

    # Correctness vs pure-JAX reference.
    r_same = _ref_block(block_same, x)
    r_bneck = _ref_block(block_bneck, x)
    err = max(float(jnp.max(jnp.abs(y_same - r_same))),
              float(jnp.max(jnp.abs(y_bneck - r_bneck))))
    assert err < 1e-3, f"max abs error vs reference: {err}"

    print("KERNEL_OK")
</pallas_src>

<mosaic_0001>
module attributes {stable_mosaic.version = 11 : i64} {
  func.func @kernel(%arg0: i32, %arg1: i32, %arg2: memref<12x128xf32, #tpu.memory_space<vmem>>, %arg3: memref<4x12xf32, #tpu.memory_space<vmem>>, %arg4: memref<4x1xf32, #tpu.memory_space<vmem>>, %arg5: memref<4x128xf32, #tpu.memory_space<vmem>>, %arg6: memref<4x1xf32, #tpu.memory_space<vmem>>, %arg7: memref<4x1xf32, #tpu.memory_space<vmem>>) attributes {dimension_semantics = [#tpu.dimension_semantics<arbitrary>, #tpu.dimension_semantics<arbitrary>], iteration_bounds = array<i64: 2, 1>, scalar_prefetch = 0 : i64, scratch_operands = 2 : i64, tpu.core_type = #tpu.core_type<tc>, window_params = [{transform_indices = @transform_0, window_bounds = array<i64: 12, 128>}, {pipeline_mode = #tpu.pipeline_mode<synchronous>, transform_indices = @transform_1, window_bounds = array<i64: 4, 12>}, {pipeline_mode = #tpu.pipeline_mode<synchronous>, transform_indices = @transform_2, window_bounds = array<i64: 4, 1>}, {transform_indices = @transform_3, window_bounds = array<i64: 4, 128>}]} {
    %c0 = arith.constant 0 : index
    %c0_0 = arith.constant 0 : index
    %0 = vector.load %arg3[%c0, %c0_0] : memref<4x12xf32, #tpu.memory_space<vmem>>, vector<4x12xf32>
    %c0_1 = arith.constant 0 : index
    %c0_2 = arith.constant 0 : index
    %1 = vector.load %arg2[%c0_1, %c0_2] : memref<12x128xf32, #tpu.memory_space<vmem>>, vector<12x128xf32>
    %cst = arith.constant dense<0.000000e+00> : vector<4x128xf32>
    %2 = tpu.matmul %0, %1, %cst {dimension_numbers = #tpu.dot_dimension_numbers<[1], [0], [0], [1], [0, 0, 1, 1], [], []>} : vector<4x12xf32>, vector<12x128xf32>, vector<4x128xf32> -> vector<4x128xf32>
    %c0_3 = arith.constant 0 : index
    %c0_4 = arith.constant 0 : index
    %3 = vector.load %arg4[%c0_3, %c0_4] : memref<4x1xf32, #tpu.memory_space<vmem>>, vector<4x1xf32>
    %4 = vector.broadcast %3 : vector<4x1xf32> to vector<4x128xf32>
    %5 = arith.addf %2, %4 : vector<4x128xf32>
    %cst_5 = arith.constant 0.000000e+00 : f32
    %6 = vector.broadcast %cst_5 : f32 to vector<4x128xf32>
    %7 = arith.maximumf %5, %6 : vector<4x128xf32>
    %c0_i32 = arith.constant 0 : i32
    %8 = arith.cmpi eq, %arg0, %c0_i32 : i32
    %9 = arith.extui %8 : i1 to i32
    %c0_i32_6 = arith.constant 0 : i32
    %10 = arith.cmpi ne, %9, %c0_i32_6 : i32
    scf.if %10 {
      %c0_i32_8 = arith.constant 0 : i32
      %14 = arith.cmpi eq, %arg1, %c0_i32_8 : i32
      %15 = arith.extui %14 : i1 to i32
      %c0_i32_9 = arith.constant 0 : i32
      %16 = arith.cmpi ne, %15, %c0_i32_9 : i32
      scf.if %16 {
        %cst_23 = arith.constant 0.000000e+00 : f32
        %37 = vector.broadcast %cst_23 : f32 to vector<4x1xf32>
        %c0_24 = arith.constant 0 : index
        %c0_25 = arith.constant 0 : index
        %38 = vector.load %arg6[%c0_24, %c0_25] : memref<4x1xf32, #tpu.memory_space<vmem>>, vector<4x1xf32>
        tpu.vector_store %arg6[%c0_24, %c0_25], %37 {strides = array<i32>} : memref<4x1xf32, #tpu.memory_space<vmem>>, vector<4x1xf32>,
        %cst_26 = arith.constant 0.000000e+00 : f32
        %39 = vector.broadcast %cst_26 : f32 to vector<4x1xf32>
        %c0_27 = arith.constant 0 : index
        %c0_28 = arith.constant 0 : index
        %40 = vector.load %arg7[%c0_27, %c0_28] : memref<4x1xf32, #tpu.memory_space<vmem>>, vector<4x1xf32>
        tpu.vector_store %arg7[%c0_27, %c0_28], %39 {strides = array<i32>} : memref<4x1xf32, #tpu.memory_space<vmem>>, vector<4x1xf32>,
      } else {
      }
      %c128_i32 = arith.constant 128 : i32
      %17 = arith.muli %arg1, %c128_i32 : i32
      %18 = tpu.iota {dimensions = array<i32: 1>} : vector<4x128xi32>
      %19 = vector.broadcast %17 : i32 to vector<4x128xi32>
      %20 = arith.addi %19, %18 : vector<4x128xi32>
      %c32_i32 = arith.constant 32 : i32
      %21 = vector.broadcast %c32_i32 : i32 to vector<4x128xi32>
      %22 = arith.cmpi slt, %20, %21 : vector<4x128xi32>
      %cst_10 = arith.constant 0.000000e+00 : f32
      %23 = vector.broadcast %cst_10 : f32 to vector<4x128xf32>
      %24 = arith.select %22, %7, %23 : vector<4x128xi1>, vector<4x128xf32>
      %c0_11 = arith.constant 0 : index
      %c0_12 = arith.constant 0 : index
      %25 = vector.load %arg6[%c0_11, %c0_12] : memref<4x1xf32, #tpu.memory_space<vmem>>, vector<4x1xf32>
      %cst_13 = arith.constant dense<0.000000e+00> : vector<4xf32>
      %26 = vector.multi_reduction <add>, %24, %cst_13 [1] : vector<4x128xf32> to vector<4xf32>
      %27 = vector.shape_cast %26 : vector<4xf32> to vector<4x1xf32>
      %28 = arith.addf %25, %27 : vector<4x1xf32>
      %c0_14 = arith.constant 0 : index
      %c0_15 = arith.constant 0 : index
      %29 = vector.load %arg6[%c0_14, %c0_15] : memref<4x1xf32, #tpu.memory_space<vmem>>, vector<4x1xf32>
      tpu.vector_store %arg6[%c0_14, %c0_15], %28 {strides = array<i32>} : memref<4x1xf32, #tpu.memory_space<vmem>>, vector<4x1xf32>,
      %c0_16 = arith.constant 0 : index
      %c0_17 = arith.constant 0 : index
      %30 = vector.load %arg7[%c0_16, %c0_17] : memref<4x1xf32, #tpu.memory_space<vmem>>, vector<4x1xf32>
      %31 = arith.mulf %24, %24 : vector<4x128xf32>
      %cst_18 = arith.constant dense<0.000000e+00> : vector<4xf32>
      %32 = vector.multi_reduction <add>, %31, %cst_18 [1] : vector<4x128xf32> to vector<4xf32>
      %33 = vector.shape_cast %32 : vector<4xf32> to vector<4x1xf32>
      %34 = arith.addf %30, %33 : vector<4x1xf32>
      %c0_19 = arith.constant 0 : index
      %c0_20 = arith.constant 0 : index
      %35 = vector.load %arg7[%c0_19, %c0_20] : memref<4x1xf32, #tpu.memory_space<vmem>>, vector<4x1xf32>
      tpu.vector_store %arg7[%c0_19, %c0_20], %34 {strides = array<i32>} : memref<4x1xf32, #tpu.memory_space<vmem>>, vector<4x1xf32>,
      %c0_21 = arith.constant 0 : index
      %c0_22 = arith.constant 0 : index
      %36 = vector.load %arg5[%c0_21, %c0_22] : memref<4x128xf32, #tpu.memory_space<vmem>>, vector<4x128xf32>
      tpu.vector_store %arg5[%c0_21, %c0_22], %7 {strides = array<i32>} : memref<4x128xf32, #tpu.memory_space<vmem>>, vector<4x128xf32>,
    } else {
    }
    %c1_i32 = arith.constant 1 : i32
    %11 = arith.cmpi eq, %arg0, %c1_i32 : i32
    %12 = arith.extui %11 : i1 to i32
    %c0_i32_7 = arith.constant 0 : i32
    %13 = arith.cmpi ne, %12, %c0_i32_7 : i32
    scf.if %13 {
      %c0_8 = arith.constant 0 : index
      %c0_9 = arith.constant 0 : index
      %14 = vector.load %arg6[%c0_8, %c0_9] : memref<4x1xf32, #tpu.memory_space<vmem>>, vector<4x1xf32>
      %cst_10 = arith.constant 3.125000e-02 : f32
      %15 = vector.broadcast %cst_10 : f32 to vector<4x1xf32>
      %16 = arith.mulf %14, %15 : vector<4x1xf32>
      %c0_11 = arith.constant 0 : index
      %c0_12 = arith.constant 0 : index
      %17 = vector.load %arg7[%c0_11, %c0_12] : memref<4x1xf32, #tpu.memory_space<vmem>>, vector<4x1xf32>
      %cst_13 = arith.constant 3.125000e-02 : f32
      %18 = vector.broadcast %cst_13 : f32 to vector<4x1xf32>
      %19 = arith.mulf %17, %18 : vector<4x1xf32>
      %20 = arith.mulf %16, %16 : vector<4x1xf32>
      %21 = arith.subf %19, %20 : vector<4x1xf32>
      %cst_14 = arith.constant 0.000000e+00 : f32
      %22 = vector.broadcast %cst_14 : f32 to vector<4x1xf32>
      %23 = arith.maximumf %21, %22 : vector<4x1xf32>
      %cst_15 = arith.constant 9.99999974E-6 : f32
      %24 = vector.broadcast %cst_15 : f32 to vector<4x1xf32>
      %25 = arith.addf %23, %24 : vector<4x1xf32>
      %26 = math.rsqrt %25 : vector<4x1xf32>
      %27 = vector.broadcast %16 : vector<4x1xf32> to vector<4x128xf32>
      %28 = arith.subf %7, %27 : vector<4x128xf32>
      %29 = vector.broadcast %26 : vector<4x1xf32> to vector<4x128xf32>
      %30 = arith.mulf %28, %29 : vector<4x128xf32>
      %c0_16 = arith.constant 0 : index
      %c0_17 = arith.constant 0 : index
      %31 = vector.load %arg5[%c0_16, %c0_17] : memref<4x128xf32, #tpu.memory_space<vmem>>, vector<4x128xf32>
      tpu.vector_store %arg5[%c0_16, %c0_17], %30 {strides = array<i32>} : memref<4x128xf32, #tpu.memory_space<vmem>>, vector<4x128xf32>,
    } else {
    }
    return
  }
  func.func @transform_0(%arg0: i32, %arg1: i32) -> (i32, i32) {
    %c0_i32 = arith.constant 0 : i32
    %c0_i32_0 = arith.constant 0 : i32
    return %c0_i32, %arg1 : i32, i32
  }
  func.func @transform_1(%arg0: i32, %arg1: i32) -> (i32, i32) {
    %c0_i32 = arith.constant 0 : i32
    %c0_i32_0 = arith.constant 0 : i32
    %c0_i32_1 = arith.constant 0 : i32
    return %c0_i32, %c0_i32_0 : i32, i32
  }
  func.func @transform_2(%arg0: i32, %arg1: i32) -> (i32, i32) {
    %c0_i32 = arith.constant 0 : i32
    %c0_i32_0 = arith.constant 0 : i32
    %c0_i32_1 = arith.constant 0 : i32
    return %c0_i32, %c0_i32_0 : i32, i32
  }
  func.func @transform_3(%arg0: i32, %arg1: i32) -> (i32, i32) {
    %c0_i32 = arith.constant 0 : i32
    %c0_i32_0 = arith.constant 0 : i32
    return %c0_i32, %arg1 : i32, i32
  }
}

</mosaic_0001>

<llo_original>
// kernel: tpu_custom_call.1
$region0: #{tpu_custom_call.1}
  #allocation0 [shape = 'u32[]', space=smem, size = 0x4, offset = 0x4, fixed_abs, tag = 'smem constant byte address 0x4 - core index']
  #allocation1 [shape = 'u32[72,128]{1,0:T(1,128)}', space=vmem, size = 0x9000, scoped, tag = 'internal scratch']
  #allocation2 [shape = 'f32[4,1]{1,0:T(4,128)}', space=vmem, size = 0x800, scoped, tag = 'scratch operand']
  #allocation3 [shape = 'f32[4,1]{1,0:T(4,128)}', space=vmem, size = 0x800, scoped, tag = 'scratch operand']
  %s0 = inlined_call_operand.hbm [shape: f32[12,128], index: 0, kind: input, shape index: {}]
  %s1 = inlined_call_operand.vmem [shape: f32[4,12], index: 1, kind: input, shape index: {}]
  %s2 = inlined_call_operand.vmem [shape: f32[4,1], index: 2, kind: input, shape index: {}]
  %s3 = inlined_call_operand.hbm [shape: f32[4,128], index: 3, kind: output, shape index: {}]
  %s4 = sld [smem:[#allocation0]]
  $region61: #{tpu_custom_call.1} parent=0
    _
  %s6 = ssub.s32 1, %s4
  %s7 = scalar_select 0, %s6, %s4
  $region1: #{tpu_custom_call.1} parent=0
    #allocation4 [shape = 'u8[8192]{0}', space=vmem, size = 0x2000, scoped, tag = 'input window, operand 0, single buffered']
    #allocation5 [shape = 's32[2]{0}', space=sflag, size = 0x8, scoped, tag = 'scoped memory for tpu_custom_call.1']
    #allocation6 [shape = 's32[2]{0}', space=sflag, size = 0x8, scoped, tag = 'scoped memory for tpu_custom_call.1']
    #allocation7 [shape = 'u8[2048]{0}', space=vmem, size = 0x800, scoped, tag = 'output window, operand 0, single buffered']
    %8 = vsyncpa [#allocation5], 0
    %9 = vsyncpa [#allocation6], 0
    loop: start=0, step=1, limit=4
    $region2: #{tpu_custom_call.1} parent=1 // loop_pre_header
      _
    $region3: #{tpu_custom_call.1} parent=1 // loop_header
      %s11 = sphi 0, %s15
      %p12 = scmp.ge.s32.totalorder %s11, 4
      %s18 = sphi 0, %s30
      %s19 = sphi 0, %s26
      %s20 = sphi 0, %s18
      %s21 = sphi 0, %s19
      %s22 = sphi 0, %s20
      %s23 = sphi 0, %s21
      %s33 = sphi 0, %s35
      %s36 = sphi 0, %s33
      %s37 = sphi 0, %s36
      %s53 = sphi 0, %s37
      %s57 = sphi 0, %s57
      %s59 = sphi 0, %s57
      %s60 = sphi 0, %s59
      %s74 = sphi 0, %s60
      %s78 = sphi 0, %s78
      %s80 = sphi 0, %s78
      %s81 = sphi 0, %s80
      %s95 = sphi 0, %s81
      %s101 = sphi 0, %s103
      %s104 = sphi 0, %s101
      %s105 = sphi 0, %s104
      %s121 = sphi 0, %s105
    $region4: #{tpu_custom_call.1} parent=1 // loop_header_branch
      %14 = sbr.rel (%p12) target = $region8
    $region5: #{tpu_custom_call.1} parent=1 // loop_body
      %s16 = ssub.s32 %s11, 1
      %s17 = ssub.s32 %s11, 2
      %s24 = sadd.s32 1, %s19
      %p25 = scmp.ge.s32.totalorder %s24, 1
      %s26 = scalar_select %p25, 0, %s24
      %s27 = sadd.s32 1, %s18
      %s28 = scalar_select %p25, %s27, %s18
      %p29 = scmp.ge.s32.totalorder %s28, 2
      %s30 = scalar_select %p29, 0, %s28
      %s31 = ssub.s32 %s19, %s26
      %p32 = scmp.eq.s32.totalorder %s31, 0
      %s34 = sadd.s32 %s33, 1
      %s35 = scalar_select %p32, %s33, %s34
      %p38 = pneg %p32
      %p39 = scmp.eq.s32.totalorder %s11, 1
      %p40 = por %p38, %p39
      %p41 = scmp.ne.s32.totalorder %s33, %s36
      %p42 = scmp.eq.s32.totalorder %s11, 0
      %p43 = por %p41, %p42
      %p44 = scmp.ne.s32.totalorder %s33, %s36
      %p45 = scmp.eq.s32.totalorder %s16, 1
      %p46 = por %p44, %p45
      %p47 = scmp.ne.s32.totalorder %s36, %s37
      %p48 = scmp.eq.s32.totalorder %s16, 0
      %p49 = por %p47, %p48
      %p50 = scmp.ne.s32.totalorder %s36, %s37
      %p51 = scmp.eq.s32.totalorder %s17, 1
      %p52 = por %p50, %p51
      %p54 = scmp.ne.s32.totalorder %s37, %s53
      %p55 = scmp.eq.s32.totalorder %s17, 0
      %p56 = por %p54, %p55
      %s58 = sadd.s32 %s57, 1
      %p61 = scmp.eq.s32.totalorder %s11, 1
      %p62 = scmp.ne.s32.totalorder %s57, %s59
      %p63 = scmp.eq.s32.totalorder %s11, 0
      %p64 = por %p62, %p63
      %p65 = scmp.ne.s32.totalorder %s57, %s59
      %p66 = scmp.eq.s32.totalorder %s16, 1
      %p67 = por %p65, %p66
      %p68 = scmp.ne.s32.totalorder %s59, %s60
      %p69 = scmp.eq.s32.totalorder %s16, 0
      %p70 = por %p68, %p69
      %p71 = scmp.ne.s32.totalorder %s59, %s60
      %p72 = scmp.eq.s32.totalorder %s17, 1
      %p73 = por %p71, %p72
      %p75 = scmp.ne.s32.totalorder %s60, %s74
      %p76 = scmp.eq.s32.totalorder %s17, 0
      %p77 = por %p75, %p76
      %s79 = sadd.s32 %s78, 1
      %p82 = scmp.eq.s32.totalorder %s11, 1
      %p83 = scmp.ne.s32.totalorder %s78, %s80
      %p84 = scmp.eq.s32.totalorder %s11, 0
      %p85 = por %p83, %p84
      %p86 = scmp.ne.s32.totalorder %s78, %s80
      %p87 = scmp.eq.s32.totalorder %s16, 1
      %p88 = por %p86, %p87
      %p89 = scmp.ne.s32.totalorder %s80, %s81
      %p90 = scmp.eq.s32.totalorder %s16, 0
      %p91 = por %p89, %p90
      %p92 = scmp.ne.s32.totalorder %s80, %s81
      %p93 = scmp.eq.s32.totalorder %s17, 1
      %p94 = por %p92, %p93
      %p96 = scmp.ne.s32.totalorder %s81, %s95
      %p97 = scmp.eq.s32.totalorder %s17, 0
      %p98 = por %p96, %p97
      %s99 = ssub.s32 %s19, %s26
      %p100 = scmp.eq.s32.totalorder %s99, 0
      %s102 = sadd.s32 %s101, 1
      %s103 = scalar_select %p100, %s101, %s102
      %p106 = pneg %p100
      %p107 = scmp.eq.s32.totalorder %s11, 1
      %p108 = por %p106, %p107
      %p109 = scmp.ne.s32.totalorder %s101, %s104
      %p110 = scmp.eq.s32.totalorder %s11, 0
      %p111 = por %p109, %p110
      %p112 = scmp.ne.s32.totalorder %s101, %s104
      %p113 = scmp.eq.s32.totalorder %s16, 1
      %p114 = por %p112, %p113
      %p115 = scmp.ne.s32.totalorder %s104, %s105
      %p116 = scmp.eq.s32.totalorder %s16, 0
      %p117 = por %p115, %p116
      %p118 = scmp.ne.s32.totalorder %s104, %s105
      %p119 = scmp.eq.s32.totalorder %s17, 1
      %p120 = por %p118, %p119
      %p122 = scmp.ne.s32.totalorder %s105, %s121
      %p123 = scmp.eq.s32.totalorder %s17, 0
      %p124 = por %p122, %p123
      %p125 = scmp.le.s32.totalorder 1, %s11
      %p126 = scmp.lt.s32.totalorder %s11, 3
      %p127 = pnand %p125, %p126
      %p128 = pneg %p127
      // Predicated region
      $region9: #{tpu_custom_call.1} parent=5 // pred_check
        _
      $region10: #{tpu_custom_call.1} parent=5 // pred_check_branch
        %130 = sbr.rel (%p127) target = $region12
      $region11: #{tpu_custom_call.1} parent=5 // pred_region
        %s131 = ssub.s32 %s11, 1
        // Predicated region
        $region13: #{tpu_custom_call.1} parent=11 // pred_check
          %p132 = pneg %p49
        $region14: #{tpu_custom_call.1} parent=11 // pred_check_branch
          %134 = sbr.rel (%p132) target = $region16
        $region15: #{tpu_custom_call.1} parent=11 // pred_region
          %136 = vsyncadd [#allocation5], 0
          %s137 = smul.addr %s21, 8
          %s138 = scalar_lea.hbm %s0, %s137
          %s139 = sshll.u32 %s138, 4
          %s140 = int_to_ptr.hbm [resolvable:$true] %s139
          %s141 = sshll.u32 [#allocation4], 4
          %s142 = int_to_ptr.vmem [resolvable:$true] %s141
          %147 = dma.hbm_to_vmem [thread:$0]  %s140, 256, %s142, [#allocation5], 128, 128, 8
        $region16: #{tpu_custom_call.1} parent=11 // pred_fallthru
          _
        // Predicated region
        $region17: #{tpu_custom_call.1} parent=11 // pred_check
          %p148 = pneg %p70
        $region18: #{tpu_custom_call.1} parent=11 // pred_check_branch
          %150 = sbr.rel (%p148) target = $region20
        $region19: #{tpu_custom_call.1} parent=11 // pred_region
          _
        $region20: #{tpu_custom_call.1} parent=11 // pred_fallthru
          _
        // Predicated region
        $region21: #{tpu_custom_call.1} parent=11 // pred_check
          %p151 = pneg %p91
        $region22: #{tpu_custom_call.1} parent=11 // pred_check_branch
          %153 = sbr.rel (%p151) target = $region24
        $region23: #{tpu_custom_call.1} parent=11 // pred_region
          _
        $region24: #{tpu_custom_call.1} parent=11 // pred_fallthru
          _
      $region12: #{tpu_custom_call.1} parent=5 // pred_fallthru
        _
      %p154 = scmp.lt.s32.totalorder %s11, 2
      // Predicated region
      $region25: #{tpu_custom_call.1} parent=5 // pred_check
        %p155 = pneg %p154
      $region26: #{tpu_custom_call.1} parent=5 // pred_check_branch
        %157 = sbr.rel (%p155) target = $region28
      $region27: #{tpu_custom_call.1} parent=5 // pred_region
        _
      $region28: #{tpu_custom_call.1} parent=5 // pred_fallthru
        _
      %p158 = scmp.le.s32.totalorder 1, %s11
      %p159 = scmp.lt.s32.totalorder %s11, 3
      %p160 = pnand %p158, %p159
      %p161 = pneg %p160
      // Predicated region
      $region29: #{tpu_custom_call.1} parent=5 // pred_check
        _
      $region30: #{tpu_custom_call.1} parent=5 // pred_check_branch
        %163 = sbr.rel (%p160) target = $region32
      $region31: #{tpu_custom_call.1} parent=5 // pred_region
        %s164 = ssub.s32 %s11, 1
        // Predicated region
        $region33: #{tpu_custom_call.1} parent=31 // pred_check
          %p165 = pneg %p49
        $region34: #{tpu_custom_call.1} parent=31 // pred_check_branch
          %167 = sbr.rel (%p165) target = $region36
        $region35: #{tpu_custom_call.1} parent=31 // pred_region
          %169 = dma.done [#allocation5], 256
        $region36: #{tpu_custom_call.1} parent=31 // pred_fallthru
          _
        %p170 = pneg %p49
        %p171 = pneg %p46
        %p172 = pneg %p70
        %p173 = pneg %p67
        %p174 = pneg %p91
        %p175 = pneg %p88
        %p176 = pneg %p117
        %p177 = pneg %p114
        %v178 = vld [vmem:[%s1] sm:$0xf]
        %v179 = vld [vmem:[#allocation4] sm:$0xff]
        %v180 = vld [vmem:[#allocation4 + $0x8] sm:$0xf]
        %v181 = vld [vmem:[%s2] sm:$0xf]
        %183 = vset.pattern.permute.xlu0 0
        %184 = vperm.xlu0 %183, %v181
        %v185 = vpop.permute.xlu0 %184
        %vm187 = vcmask 97280
        %v189 = vsel %vm187, %v178, 0
        %vm191 = vcmask 1043456
        %v193 = vsel %vm191, %v180, 0
        %195 = vmatpush.msra.mxu0 0.0
        %196 = vmatpush.msra.mxu0 0.0
        %197 = vmatpush.msra.mxu0 0.0
        %198 = vmatpush.msra.mxu0 0.0
        %199 = vmatpush.msra.mxu0 0.0
        %200 = vmatpush.msra.mxu0 0.0
        %201 = vmatpush.msra.mxu0 0.0
        %202 = vmatpush.msra.mxu0 0.0
        %203 = vmatpush.msra.mxu0 0.0
        %204 = vmatpush.msra.mxu0 0.0
        %205 = vmatpush.msra.mxu0 0.0
        %206 = vmatpush.msra.mxu0 0.0
        %207 = vmatpush.msra.mxu0 0.0
        %208 = vmatpush.msra.mxu0 0.0
        %209 = vmatpush.msra.mxu0 %v193
        %210 = vmatpush.msra.mxu0 %v179
        %211 = vmatmul.f32.gmra.mxu0 %v189
        %v212 = vpop.f32.mrf.mxu0
        %v213 = vadd.f32 %v185, %v212
        %214 = vdwg.mxu0
        %v215 = vmax.f32 %v213, 0.0
        %p216 = scmp.eq.s32.totalorder %s20, 0
        // Predicated region
        $region37: #{tpu_custom_call.1} parent=31 // pred_check
          %p217 = pneg %p216
        $region38: #{tpu_custom_call.1} parent=31 // pred_check_branch
          %219 = sbr.rel (%p217) target = $region40
        $region39: #{tpu_custom_call.1} parent=31 // pred_region
          %p220 = scmp.eq.s32.totalorder %s21, 0
          // Predicated region
          $region41: #{tpu_custom_call.1} parent=39 // pred_check
            %p221 = pneg %p220
          $region42: #{tpu_custom_call.1} parent=39 // pred_check_branch
            %223 = sbr.rel (%p221) target = $region44
          $region43: #{tpu_custom_call.1} parent=39 // pred_region
            %vm224 = vcmask 3072
            %225 = vst.msk [vmem:[#allocation2] sm:$0xf] %vm224, 0.0
            %226 = vst.msk [vmem:[#allocation3] sm:$0xf] %vm224, 0.0
          $region44: #{tpu_custom_call.1} parent=39 // pred_fallthru
            _
          %s227 = smul.u32 %s21, 128
          %v228 = vlaneseq
          %v229 = vand.u32 %v228, 127
          %v230 = vstv %s227
          %v231 = vadd.s32 %v230, %v229
          %vm232 = vcmp.lt.s32.totalorder %v231, 32
          %v233 = vsel %vm232, %v215, 0.0
          %v234 = vld [vmem:[#allocation2] sm:$0xf]
          %v235 = vsel %vm191, %v233, 0.0
          %236 = vadd.xlane.f32.xlu0 %v235
          %v237 = vpop.xlane.xlu0 %236
          %v238 = vadd.f32 %v234, %v237
          %vm239 = vcmask 3072
          %240 = vst.msk [vmem:[#allocation2] sm:$0xf] %vm239, %v238
          %v241 = vld [vmem:[#allocation3] sm:$0xf]
          %v242 = vmul.f32 %v233, %v233
          %v243 = vsel %vm191, %v242, 0.0
          %244 = vadd.xlane.f32.xlu0 %v243
          %v245 = vpop.xlane.xlu0 %244
          %v246 = vadd.f32 %v241, %v245
          %247 = vst.msk [vmem:[#allocation3] sm:$0xf] %vm239, %v246
          %248 = vst [vmem:[#allocation7] sm:$0xf] %v215
        $region40: #{tpu_custom_call.1} parent=31 // pred_fallthru
          _
        %p249 = scmp.eq.s32.totalorder %s20, 1
        // Predicated region
        $region45: #{tpu_custom_call.1} parent=31 // pred_check
          %p250 = pneg %p249
        $region46: #{tpu_custom_call.1} parent=31 // pred_check_branch
          %252 = sbr.rel (%p250) target = $region48
        $region47: #{tpu_custom_call.1} parent=31 // pred_region
          %v253 = vld [vmem:[#allocation2] sm:$0xf]
          %v254 = vmul.f32 %v253, 0.03125
          %v255 = vld [vmem:[#allocation3] sm:$0xf]
          %v256 = vmul.f32 %v255, 0.03125
          %v257 = vmul.f32 %v254, %v254
          %v258 = vsub.f32 %v256, %v257
          %v259 = vmax.f32 %v258, 0.0
          %v260 = vadd.f32 %v259, 1e-05
          %v261 = vrsqrt.pop %v260
          %v262 = vmul.f32 %v261, %v260
          %v263 = vmul.f32 %v262, %v261
          %v264 = vmul.f32 0.5, %v263
          %v265 = vsub.f32 1.5, %v264
          %v266 = vmul.f32 %v261, %v265
          %vm267 = vweird.f32 %v260
          %vm268 = vweird.f32 %v261
          %vm269 = vmor %vm267, %vm268
          %v270 = vsel %vm269, %v261, %v266
          %272 = vset.pattern.permute.xlu0 0
          %273 = vperm.xlu0 %272, %v254
          %v274 = vpop.permute.xlu0 %273
          %v276 = vsub.f32 %v215, %v274
          %278 = vset.pattern.permute.xlu0 0
          %279 = vperm.xlu0 %278, %v270
          %v280 = vpop.permute.xlu0 %279
          %v282 = vmul.f32 %v276, %v280
          %283 = vst [vmem:[#allocation7] sm:$0xf] %v282
        $region48: #{tpu_custom_call.1} parent=31 // pred_fallthru
          _
        // Predicated region
        $region49: #{tpu_custom_call.1} parent=31 // pred_check
          %p284 = pneg %p114
        $region50: #{tpu_custom_call.1} parent=31 // pred_check_branch
          %286 = sbr.rel (%p284) target = $region52
        $region51: #{tpu_custom_call.1} parent=31 // pred_region
          %288 = vsyncadd [#allocation6], 0
          %s289 = smul.addr %s21, 4
          %s290 = scalar_lea.hbm %s3, %s289
          %s292 = sshll.u32 [#allocation7], 4
          %s293 = int_to_ptr.vmem [resolvable:$true] %s292
          %s294 = sshll.u32 %s290, 4
          %s295 = int_to_ptr.hbm [resolvable:$true] %s294
          %297 = dma.vmem_to_hbm [thread:$0]  %s293, 64, %s295, [#allocation6]
        $region52: #{tpu_custom_call.1} parent=31 // pred_fallthru
          _
        // Predicated region
        $region53: #{tpu_custom_call.1} parent=31 // pred_check
          %p298 = pneg %p114
        $region54: #{tpu_custom_call.1} parent=31 // pred_check_branch
          %300 = sbr.rel (%p298) target = $region56
        $region55: #{tpu_custom_call.1} parent=31 // pred_region
          %302 = dma.done [#allocation6], 64
        $region56: #{tpu_custom_call.1} parent=31 // pred_fallthru
          _
      $region32: #{tpu_custom_call.1} parent=5 // pred_fallthru
        _
      %p303 = scmp.le.s32.totalorder 2, %s11
      // Predicated region
      $region57: #{tpu_custom_call.1} parent=5 // pred_check
        %p304 = pneg %p303
      $region58: #{tpu_custom_call.1} parent=5 // pred_check_branch
        %306 = sbr.rel (%p304) target = $region60
      $region59: #{tpu_custom_call.1} parent=5 // pred_region
        %s307 = ssub.s32 %s11, 2
      $region60: #{tpu_custom_call.1} parent=5 // pred_fallthru
        _
    $region6: #{tpu_custom_call.1} parent=1 // loop_footer
      %s15 = sadd.s32 1, %s11
    $region7: #{tpu_custom_call.1} parent=1 // loop_footer_branch
      %10 = sbr.rel target = $region3
    $region8: #{tpu_custom_call.1} parent=1 // loop_exit
      _
    %308 = vsyncpa [#allocation5], 1
    %s309 = scalar_lea.sflag [#allocation5], 1
    %310 = vsyncpa %s309, 1
    %311 = vsyncpa [#allocation6], 1
    %s312 = scalar_lea.sflag [#allocation6], 1
    %313 = vsyncpa %s312, 1

</llo_original>
